<compile_context>
chip_gen: v5e
topology: v5e:2x2
jax: 0.10.0
libtpu: 0.0.40
codegen_flags: <defaults>
</compile_context>

<pallas_src>
import functools

import jax
import jax.numpy as jnp
import numpy as np
from jax.experimental import pallas as pl
from jax.experimental.pallas import tpu as pltpu


# ----------------------------------------------------------------------------
# Pallas kernel: fused MLP feature extractor + (fused) box predictor
# ----------------------------------------------------------------------------
def _box_head_kernel(x_ref, w6_ref, b6_ref, w7_ref, b7_ref, wh_ref, bh_ref,
                     feat_ref, head_ref, h6_ref):
    # One row tile of ROIs.  All weights/biases are VMEM-resident (constant
    # index maps, single-buffered), so the only per-grid-step DMAs are the x
    # row tile in and the two output tiles out.

    # fc6: full-K contraction in one MXU pass (bf16 operands, f32 accumulation)
    h6 = jnp.dot(x_ref[...], w6_ref[...], preferred_element_type=jnp.float32)
    h6 = jnp.maximum(h6 + b6_ref[...], 0.0)
    # Stage h6 through a named bf16 scratch: bounds epilogue live intermediates
    # (Mosaic internal scratch) and feeds fc7 with a lane-dense bf16 operand.
    h6_ref[...] = h6.astype(jnp.bfloat16)

    # fc7 + ReLU
    h7 = jnp.dot(h6_ref[...], w7_ref[...], preferred_element_type=jnp.float32)
    h7 = jnp.maximum(h7 + b7_ref[...], 0.0)

    # feat output (bf16) doubles as the staging buffer for the fused head matmul
    feat_ref[...] = h7.astype(feat_ref.dtype)

    # fused predictor: cls_score and bbox_pred in one lane-dense matmul
    head_ref[...] = (
        jnp.dot(feat_ref[...].astype(jnp.bfloat16), wh_ref[...],
                preferred_element_type=jnp.float32)
        + bh_ref[...])


def box_head_pallas(x, w6, b6, w7, b7, wc, bc, wb, bb, *, tm=256,
                    feat_dtype=jnp.bfloat16):
    """x: [R, IN] flattened pooled ROI features (HWC flatten order; bf16 ok).

    `w6` must already be row-permuted to the same flatten order as `x`
    (see roi_box_head_forward).  Returns
    (feat [R, Hd] feat_dtype, cls_logits [R, NC] f32, box_reg [R, 4*NC] f32).
    """
    R, IN = x.shape
    Hd = w6.shape[1]
    NC = wc.shape[1]
    NB = wb.shape[1]

    def rup(v, m):
        return ((v + m - 1) // m) * m

    # --- lane-dense padding only (multiples of 128); no tk-derived K padding --
    IN_p = rup(IN, 128)
    Hd_p = rup(Hd, 128)
    HO = NC + NB
    HO_p = rup(HO, 128)
    # tm=256 feeds the 2x256^2 MXU and gives an even row-tile count (>=2) at
    # production ROI counts for 2-TC balance; clamp for tiny R in unit tests.
    tm = max(8, min(tm, rup(R, 8)))
    r_p = rup(R, tm)

    # fuse the two predictor heads into a single lane-dense matmul / store slab
    w_head = jnp.concatenate([wc, wb], axis=1)            # [Hd, NC+NB]
    b_head = jnp.concatenate([bc, bb], axis=0)            # [NC+NB]

    # zero-pad; MXU operands in bf16, bias / accumulation math stays f32
    x_p = jnp.pad(x.astype(jnp.bfloat16), ((0, r_p - R), (0, IN_p - IN)))
    w6_p = jnp.pad(w6, ((0, IN_p - IN), (0, Hd_p - Hd))).astype(jnp.bfloat16)
    w7_p = jnp.pad(w7, ((0, Hd_p - Hd), (0, Hd_p - Hd))).astype(jnp.bfloat16)
    wh_p = jnp.pad(w_head, ((0, Hd_p - Hd), (0, HO_p - HO))).astype(jnp.bfloat16)
    b6_p = jnp.pad(b6, (0, Hd_p - Hd)).reshape(1, Hd_p).astype(jnp.float32)
    b7_p = jnp.pad(b7, (0, Hd_p - Hd)).reshape(1, Hd_p).astype(jnp.float32)
    bh_p = jnp.pad(b_head, (0, HO_p - HO)).reshape(1, HO_p).astype(jnp.float32)

    grid = (r_p // tm,)

    # VMEM budget: resident single-buffered weights + double-buffered x tile +
    # outputs.  ~100 MiB on 128-MiB chips (v5e/v6e), ~53 MiB on v7x's 64 MiB.
    try:
        vmem_cap = pltpu.get_tpu_info().vmem_capacity_bytes
    except Exception:
        vmem_cap = 128 * 1024 * 1024
    vmem_limit = int(min(0.84 * vmem_cap, 100 * 1024 * 1024))

    # Constant-index-map operands are fetched once; single-buffer them so the
    # second pipeline buffer doesn't burn VMEM (matters on v7x's 64 MiB).
    def const_spec(shape):
        return pl.BlockSpec(shape, lambda i: (0,) * len(shape),
                            pipeline_mode=pl.Buffered(1))

    # advisory cost estimate reflecting actual traffic: every operand once
    flops = 2 * r_p * (IN_p * Hd_p + Hd_p * Hd_p + Hd_p * HO_p)
    bytes_accessed = (
        2 * (x_p.size + w6_p.size + w7_p.size + wh_p.size)        # bf16 inputs
        + 4 * (b6_p.size + b7_p.size + bh_p.size)                 # f32 biases
        + np.dtype(feat_dtype).itemsize * r_p * Hd_p              # feat out
        + 4 * r_p * HO_p)                                         # f32 head out
    cost = pl.CostEstimate(flops=int(flops), transcendentals=0,
                           bytes_accessed=int(bytes_accessed))

    feat, head = pl.pallas_call(
        _box_head_kernel,
        out_shape=(
            jax.ShapeDtypeStruct((r_p, Hd_p), feat_dtype),
            jax.ShapeDtypeStruct((r_p, HO_p), jnp.float32),
        ),
        grid=grid,
        in_specs=[
            pl.BlockSpec((tm, IN_p), lambda i: (i, 0)),   # x row tile (pipelined)
            const_spec((IN_p, Hd_p)),                     # fc6 weight (resident)
            const_spec((1, Hd_p)),                        # fc6 bias
            const_spec((Hd_p, Hd_p)),                     # fc7 weight (resident)
            const_spec((1, Hd_p)),                        # fc7 bias
            const_spec((Hd_p, HO_p)),                     # fused head weight
            const_spec((1, HO_p)),                        # fused head bias
        ],
        out_specs=(
            pl.BlockSpec((tm, Hd_p), lambda i: (i, 0)),
            pl.BlockSpec((tm, HO_p), lambda i: (i, 0)),
        ),
        scratch_shapes=[pltpu.VMEM((tm, Hd_p), jnp.bfloat16)],  # h6 staging
        compiler_params=pltpu.CompilerParams(
            dimension_semantics=("parallel",),
            vmem_limit_bytes=vmem_limit,
        ),
        cost_estimate=cost,
    )(x_p, w6_p, b6_p, w7_p, b7_p, wh_p, bh_p)

    feat = feat[:R, :Hd]
    cls_logits = head[:R, :NC]
    box_reg = head[:R, NC:NC + NB]
    return feat, cls_logits, box_reg


# ----------------------------------------------------------------------------
# ROIAlign pooler (plain-JAX glue; bilinear sampling at regular sample points)
# Gathers run channel-dense (NHWC, C on the lane axis).  Output is per-ROI
# [P, P, C] (HWC) in bf16 -- no per-ROI transpose, no extra f32 pass; the fc6
# weight rows are permuted once in the wrapper to match this flatten order.
# ----------------------------------------------------------------------------
def roi_align(features, rois, batch_idx, *, output_size, spatial_scale,
              sampling_ratio=2, out_dtype=jnp.bfloat16):
    """features: [B, C, H, W] (NCHW).  rois: [R, 4] (x1,y1,x2,y2) image coords.
    Returns pooled features [R, P, P, C]."""
    B, C, H, W = features.shape
    feats_nhwc = jnp.transpose(features, (0, 2, 3, 1))    # [B, H, W, C]
    P, sr = output_size, sampling_ratio

    def one_roi(box, bi):
        feat = feats_nhwc[bi]                              # [H, W, C]
        x1, y1, x2, y2 = box * spatial_scale
        roi_w = jnp.maximum(x2 - x1, 1.0)
        roi_h = jnp.maximum(y2 - y1, 1.0)
        bin_w = roi_w / P
        bin_h = roi_h / P
        ys = y1 + (jnp.arange(P * sr, dtype=jnp.float32) + 0.5) * (bin_h / sr)
        xs = x1 + (jnp.arange(P * sr, dtype=jnp.float32) + 0.5) * (bin_w / sr)
        yy, xx = jnp.meshgrid(ys, xs, indexing="ij")
        # TODO(synk): maskrcnn-benchmark zeroes samples falling >1px outside the
        # map and supports aligned=True / adaptive sampling_ratio; we clamp.
        yy = jnp.clip(yy, 0.0, H - 1.0)
        xx = jnp.clip(xx, 0.0, W - 1.0)
        y0 = jnp.floor(yy).astype(jnp.int32)
        x0 = jnp.floor(xx).astype(jnp.int32)
        y1i = jnp.minimum(y0 + 1, H - 1)
        x1i = jnp.minimum(x0 + 1, W - 1)
        ly = yy - y0.astype(jnp.float32)
        lx = xx - x0.astype(jnp.float32)
        hy = 1.0 - ly
        hx = 1.0 - lx
        # channel-dense gathers: each fetch pulls a full [C] vector
        v00 = feat[y0, x0]                                 # [P*sr, P*sr, C]
        v01 = feat[y0, x1i]
        v10 = feat[y1i, x0]
        v11 = feat[y1i, x1i]
        samp = (v00 * (hy * hx)[..., None] + v01 * (hy * lx)[..., None]
                + v10 * (ly * hx)[..., None] + v11 * (ly * lx)[..., None])
        pooled = samp.reshape(P, sr, P, sr, C).mean(axis=(1, 3))   # [P, P, C]
        return pooled.astype(out_dtype)

    # TODO(synk): at production FPN sizes this XLA gather becomes the wall-clock
    # dominator; a scalar-prefetched Pallas gather (PrefetchScalarGridSpec with
    # per-ROI corner indices, feature map in HBM via memory_space=pl.ANY, [1,1,C]
    # channel-dense DMAs) is the next optimization step.
    return jax.vmap(one_roi)(rois, batch_idx)


# ----------------------------------------------------------------------------
# ROIBoxHead forward (inference): x, class_logits, box_regression
# ----------------------------------------------------------------------------
def roi_box_head_forward(features, rois, batch_idx, params, *, resolution,
                         spatial_scale):
    # TODO(synk): single-level pooler only; the FPN LevelMapper (per-ROI pyramid
    # level assignment) is host-side control flow not implemented here.
    pooled = roi_align(features, rois, batch_idx, output_size=resolution,
                       spatial_scale=spatial_scale, out_dtype=jnp.bfloat16)
    R = pooled.shape[0]
    x_flat = pooled.reshape(R, -1)            # HWC flatten order, bf16

    # Permute fc6 weight rows once (CHW flatten order -> HWC flatten order) so
    # the pooler can skip the per-ROI [C,P,P] transpose; semantically identical
    # to PyTorch's x.view(N, -1) @ fc6_w.
    C = features.shape[1]
    P = resolution
    Hd = params["fc6_w"].shape[1]
    fc6_w_hwc = (params["fc6_w"].reshape(C, P, P, Hd)
                 .transpose(1, 2, 0, 3).reshape(C * P * P, Hd))

    feat, cls_logits, box_reg = box_head_pallas(
        x_flat,
        fc6_w_hwc, params["fc6_b"],
        params["fc7_w"], params["fc7_b"],
        params["cls_w"], params["cls_b"],
        params["bbox_w"], params["bbox_b"],
    )
    # TODO(synk): post_processor (box decoding + per-class softmax + NMS) and
    # loss_evaluator / proposal subsampling are training/post-processing glue
    # with no clean Pallas equivalent; inference returns raw logits/regression.
    return feat, cls_logits, box_reg


if __name__ == "__main__":
    # Small synthetic config:
    B, C, Hf, Wf = 2, 4, 16, 16          # feature maps, NCHW
    IMG = 64                              # image size -> spatial_scale = 16/64
    RESOLUTION = 4                        # POOLER_RESOLUTION
    HIDDEN = 32                           # MLP_HEAD_DIM
    NUM_CLASSES = 8
    IN_DIM = C * RESOLUTION * RESOLUTION  # 64

    key = jax.random.PRNGKey(0)
    k_feat, k6, k7, kc, kb = jax.random.split(key, 5)

    features = jax.random.normal(k_feat, (B, C, Hf, Wf), dtype=jnp.float32)

    # 4 proposals per image (x1, y1, x2, y2) in image coordinates
    rois = jnp.array(
        [[2.0, 3.0, 30.0, 40.0],
         [10.0, 10.0, 50.0, 50.0],
         [0.0, 0.0, 63.0, 63.0],
         [20.0, 5.0, 45.0, 60.0],
         [5.0, 5.0, 25.0, 25.0],
         [15.0, 20.0, 60.0, 55.0],
         [1.0, 30.0, 40.0, 63.0],
         [8.0, 12.0, 56.0, 44.0]], dtype=jnp.float32)
    batch_idx = jnp.array([0, 0, 0, 0, 1, 1, 1, 1], dtype=jnp.int32)

    # Deterministic synthetic parameters (shapes from FPN2MLPFeatureExtractor / FPNPredictor)
    params = {
        "fc6_w": jax.random.normal(k6, (IN_DIM, HIDDEN), jnp.float32) * 0.01,
        "fc6_b": jnp.zeros((HIDDEN,), jnp.float32),
        "fc7_w": jax.random.normal(k7, (HIDDEN, HIDDEN), jnp.float32) * 0.01,
        "fc7_b": jnp.zeros((HIDDEN,), jnp.float32),
        "cls_w": jax.random.normal(kc, (HIDDEN, NUM_CLASSES), jnp.float32) * 0.01,
        "cls_b": jnp.zeros((NUM_CLASSES,), jnp.float32),
        "bbox_w": jax.random.normal(kb, (HIDDEN, NUM_CLASSES * 4), jnp.float32) * 0.001,
        "bbox_b": jnp.zeros((NUM_CLASSES * 4,), jnp.float32),
    }

    fwd = jax.jit(functools.partial(
        roi_box_head_forward, resolution=RESOLUTION, spatial_scale=Hf / IMG))
    feat, cls_logits, box_reg = fwd(features, rois, batch_idx, params)
    jax.block_until_ready((feat, cls_logits, box_reg))

    # Reference check (plain JAX) against the PyTorch-faithful CHW flatten order
    # with the ORIGINAL (unpermuted) fc6 weight -- validates both the fused
    # Pallas MLP/predictor and the HWC weight permutation.  Uses the same bf16
    # MXU operands / f32 accumulation the kernel uses.
    pooled_ref = roi_align(features, rois, batch_idx, output_size=RESOLUTION,
                           spatial_scale=Hf / IMG, out_dtype=jnp.float32)
    x_chw = jnp.transpose(pooled_ref, (0, 3, 1, 2)).reshape(pooled_ref.shape[0], -1)

    def bdot(a, b):
        return jnp.dot(a.astype(jnp.bfloat16), b.astype(jnp.bfloat16),
                       preferred_element_type=jnp.float32)

    h6 = jnp.maximum(bdot(x_chw, params["fc6_w"]) + params["fc6_b"], 0.0)
    h7 = jnp.maximum(bdot(h6, params["fc7_w"]) + params["fc7_b"], 0.0)
    ref_cls = bdot(h7, params["cls_w"]) + params["cls_b"]
    ref_box = bdot(h7, params["bbox_w"]) + params["bbox_b"]

    assert feat.shape == (8, HIDDEN)
    assert cls_logits.shape == (8, NUM_CLASSES)
    assert box_reg.shape == (8, NUM_CLASSES * 4)
    # feat is emitted in bf16 -> relaxed relative tolerance vs the f32 reference
    np.testing.assert_allclose(np.asarray(feat).astype(np.float32),
                               np.asarray(h7), rtol=2e-2, atol=1e-4)
    np.testing.assert_allclose(np.asarray(cls_logits), np.asarray(ref_cls),
                               rtol=2e-2, atol=1e-4)
    np.testing.assert_allclose(np.asarray(box_reg), np.asarray(ref_box),
                               rtol=2e-2, atol=1e-4)

    print("KERNEL_OK")
</pallas_src>

<mosaic_0001>
module attributes {stable_mosaic.version = 11 : i64} {
  func.func @_box_head_kernel(%arg0: i32, %arg1: memref<8x128xbf16, #tpu.memory_space<vmem>>, %arg2: memref<128x128xbf16, #tpu.memory_space<vmem>>, %arg3: memref<1x128xf32, #tpu.memory_space<vmem>>, %arg4: memref<128x128xbf16, #tpu.memory_space<vmem>>, %arg5: memref<1x128xf32, #tpu.memory_space<vmem>>, %arg6: memref<128x128xbf16, #tpu.memory_space<vmem>>, %arg7: memref<1x128xf32, #tpu.memory_space<vmem>>, %arg8: memref<8x128xbf16, #tpu.memory_space<vmem>>, %arg9: memref<8x128xf32, #tpu.memory_space<vmem>>, %arg10: memref<8x128xbf16, #tpu.memory_space<vmem>>) attributes {dimension_semantics = [#tpu.dimension_semantics<parallel>], iteration_bounds = array<i64: 1>, scalar_prefetch = 0 : i64, scratch_operands = 1 : i64, tpu.core_type = #tpu.core_type<tc>, window_params = [{transform_indices = @transform_0, window_bounds = array<i64: 8, 128>}, {pipeline_mode = #tpu.pipeline_mode<synchronous>, transform_indices = @transform_1, window_bounds = array<i64: 128, 128>}, {pipeline_mode = #tpu.pipeline_mode<synchronous>, transform_indices = @transform_2, window_bounds = array<i64: 1, 128>}, {pipeline_mode = #tpu.pipeline_mode<synchronous>, transform_indices = @transform_3, window_bounds = array<i64: 128, 128>}, {pipeline_mode = #tpu.pipeline_mode<synchronous>, transform_indices = @transform_4, window_bounds = array<i64: 1, 128>}, {pipeline_mode = #tpu.pipeline_mode<synchronous>, transform_indices = @transform_5, window_bounds = array<i64: 128, 128>}, {pipeline_mode = #tpu.pipeline_mode<synchronous>, transform_indices = @transform_6, window_bounds = array<i64: 1, 128>}, {transform_indices = @transform_7, window_bounds = array<i64: 8, 128>}, {transform_indices = @transform_8, window_bounds = array<i64: 8, 128>}]} {
    %c0 = arith.constant 0 : index
    %c0_0 = arith.constant 0 : index
    %0 = vector.load %arg1[%c0, %c0_0] : memref<8x128xbf16, #tpu.memory_space<vmem>>, vector<8x128xbf16>
    %c0_1 = arith.constant 0 : index
    %c0_2 = arith.constant 0 : index
    %1 = vector.load %arg2[%c0_1, %c0_2] : memref<128x128xbf16, #tpu.memory_space<vmem>>, vector<128x128xbf16>
    %cst = arith.constant dense<0.000000e+00> : vector<8x128xf32>
    %2 = tpu.matmul %0, %1, %cst {dimension_numbers = #tpu.dot_dimension_numbers<[1], [0], [0], [1], [0, 0, 1, 1], [], []>} : vector<8x128xbf16>, vector<128x128xbf16>, vector<8x128xf32> -> vector<8x128xf32>
    %c0_3 = arith.constant 0 : index
    %c0_4 = arith.constant 0 : index
    %3 = vector.load %arg3[%c0_3, %c0_4] : memref<1x128xf32, #tpu.memory_space<vmem>>, vector<1x128xf32>
    %4 = vector.broadcast %3 : vector<1x128xf32> to vector<8x128xf32>
    %5 = arith.addf %2, %4 : vector<8x128xf32>
    %cst_5 = arith.constant 0.000000e+00 : f32
    %6 = vector.broadcast %cst_5 : f32 to vector<8x128xf32>
    %7 = arith.maximumf %5, %6 : vector<8x128xf32>
    %8 = arith.truncf %7 : vector<8x128xf32> to vector<8x128xbf16>
    %c0_6 = arith.constant 0 : index
    %c0_7 = arith.constant 0 : index
    %9 = vector.load %arg10[%c0_6, %c0_7] : memref<8x128xbf16, #tpu.memory_space<vmem>>, vector<8x128xbf16>
    tpu.vector_store %arg10[%c0_6, %c0_7], %8 {strides = array<i32>} : memref<8x128xbf16, #tpu.memory_space<vmem>>, vector<8x128xbf16>,
    %c0_8 = arith.constant 0 : index
    %c0_9 = arith.constant 0 : index
    %10 = vector.load %arg10[%c0_8, %c0_9] : memref<8x128xbf16, #tpu.memory_space<vmem>>, vector<8x128xbf16>
    %c0_10 = arith.constant 0 : index
    %c0_11 = arith.constant 0 : index
    %11 = vector.load %arg4[%c0_10, %c0_11] : memref<128x128xbf16, #tpu.memory_space<vmem>>, vector<128x128xbf16>
    %cst_12 = arith.constant dense<0.000000e+00> : vector<8x128xf32>
    %12 = tpu.matmul %10, %11, %cst_12 {dimension_numbers = #tpu.dot_dimension_numbers<[1], [0], [0], [1], [0, 0, 1, 1], [], []>} : vector<8x128xbf16>, vector<128x128xbf16>, vector<8x128xf32> -> vector<8x128xf32>
    %c0_13 = arith.constant 0 : index
    %c0_14 = arith.constant 0 : index
    %13 = vector.load %arg5[%c0_13, %c0_14] : memref<1x128xf32, #tpu.memory_space<vmem>>, vector<1x128xf32>
    %14 = vector.broadcast %13 : vector<1x128xf32> to vector<8x128xf32>
    %15 = arith.addf %12, %14 : vector<8x128xf32>
    %cst_15 = arith.constant 0.000000e+00 : f32
    %16 = vector.broadcast %cst_15 : f32 to vector<8x128xf32>
    %17 = arith.maximumf %15, %16 : vector<8x128xf32>
    %18 = arith.truncf %17 : vector<8x128xf32> to vector<8x128xbf16>
    %c0_16 = arith.constant 0 : index
    %c0_17 = arith.constant 0 : index
    %19 = vector.load %arg8[%c0_16, %c0_17] : memref<8x128xbf16, #tpu.memory_space<vmem>>, vector<8x128xbf16>
    tpu.vector_store %arg8[%c0_16, %c0_17], %18 {strides = array<i32>} : memref<8x128xbf16, #tpu.memory_space<vmem>>, vector<8x128xbf16>,
    %c0_18 = arith.constant 0 : index
    %c0_19 = arith.constant 0 : index
    %20 = vector.load %arg8[%c0_18, %c0_19] : memref<8x128xbf16, #tpu.memory_space<vmem>>, vector<8x128xbf16>
    %c0_20 = arith.constant 0 : index
    %c0_21 = arith.constant 0 : index
    %21 = vector.load %arg6[%c0_20, %c0_21] : memref<128x128xbf16, #tpu.memory_space<vmem>>, vector<128x128xbf16>
    %cst_22 = arith.constant dense<0.000000e+00> : vector<8x128xf32>
    %22 = tpu.matmul %20, %21, %cst_22 {dimension_numbers = #tpu.dot_dimension_numbers<[1], [0], [0], [1], [0, 0, 1, 1], [], []>} : vector<8x128xbf16>, vector<128x128xbf16>, vector<8x128xf32> -> vector<8x128xf32>
    %c0_23 = arith.constant 0 : index
    %c0_24 = arith.constant 0 : index
    %23 = vector.load %arg7[%c0_23, %c0_24] : memref<1x128xf32, #tpu.memory_space<vmem>>, vector<1x128xf32>
    %24 = vector.broadcast %23 : vector<1x128xf32> to vector<8x128xf32>
    %25 = arith.addf %22, %24 : vector<8x128xf32>
    %c0_25 = arith.constant 0 : index
    %c0_26 = arith.constant 0 : index
    %26 = vector.load %arg9[%c0_25, %c0_26] : memref<8x128xf32, #tpu.memory_space<vmem>>, vector<8x128xf32>
    tpu.vector_store %arg9[%c0_25, %c0_26], %25 {strides = array<i32>} : memref<8x128xf32, #tpu.memory_space<vmem>>, vector<8x128xf32>,
    return
  }
  func.func @transform_0(%arg0: i32) -> (i32, i32) {
    %c0_i32 = arith.constant 0 : i32
    %c0_i32_0 = arith.constant 0 : i32
    return %arg0, %c0_i32 : i32, i32
  }
  func.func @transform_1(%arg0: i32) -> (i32, i32) {
    %c0_i32 = arith.constant 0 : i32
    %c0_i32_0 = arith.constant 0 : i32
    %c0_i32_1 = arith.constant 0 : i32
    return %c0_i32, %c0_i32_0 : i32, i32
  }
  func.func @transform_2(%arg0: i32) -> (i32, i32) {
    %c0_i32 = arith.constant 0 : i32
    %c0_i32_0 = arith.constant 0 : i32
    %c0_i32_1 = arith.constant 0 : i32
    return %c0_i32, %c0_i32_0 : i32, i32
  }
  func.func @transform_3(%arg0: i32) -> (i32, i32) {
    %c0_i32 = arith.constant 0 : i32
    %c0_i32_0 = arith.constant 0 : i32
    %c0_i32_1 = arith.constant 0 : i32
    return %c0_i32, %c0_i32_0 : i32, i32
  }
  func.func @transform_4(%arg0: i32) -> (i32, i32) {
    %c0_i32 = arith.constant 0 : i32
    %c0_i32_0 = arith.constant 0 : i32
    %c0_i32_1 = arith.constant 0 : i32
    return %c0_i32, %c0_i32_0 : i32, i32
  }
  func.func @transform_5(%arg0: i32) -> (i32, i32) {
    %c0_i32 = arith.constant 0 : i32
    %c0_i32_0 = arith.constant 0 : i32
    %c0_i32_1 = arith.constant 0 : i32
    return %c0_i32, %c0_i32_0 : i32, i32
  }
  func.func @transform_6(%arg0: i32) -> (i32, i32) {
    %c0_i32 = arith.constant 0 : i32
    %c0_i32_0 = arith.constant 0 : i32
    %c0_i32_1 = arith.constant 0 : i32
    return %c0_i32, %c0_i32_0 : i32, i32
  }
  func.func @transform_7(%arg0: i32) -> (i32, i32) {
    %c0_i32 = arith.constant 0 : i32
    %c0_i32_0 = arith.constant 0 : i32
    return %arg0, %c0_i32 : i32, i32
  }
  func.func @transform_8(%arg0: i32) -> (i32, i32) {
    %c0_i32 = arith.constant 0 : i32
    %c0_i32_0 = arith.constant 0 : i32
    return %arg0, %c0_i32 : i32, i32
  }
}

</mosaic_0001>

<llo_original>
// kernel: roi_box_head_forward.1
$region0: #{roi_box_head_forward.1}
  #allocation0 [shape = 'u32[]', space=smem, size = 0x4, offset = 0x4, fixed_abs, tag = 'smem constant byte address 0x4 - core index']
  #allocation1 [shape = 'u32[72,128]{1,0:T(1,128)}', space=vmem, size = 0x9000, scoped, tag = 'internal scratch']
  #allocation2 [shape = 'bf16[8,128]{1,0:T(8,128)(2,1)}', space=vmem, size = 0x800, scoped, tag = 'scratch operand']
  %s0 = inlined_call_operand.vmem [shape: bf16[8,128], index: 0, kind: input, shape index: {}]
  %s1 = inlined_call_operand.vmem [shape: bf16[128,128], index: 1, kind: input, shape index: {}]
  %s2 = inlined_call_operand.vmem [shape: f32[1,128], index: 2, kind: input, shape index: {}]
  %s3 = inlined_call_operand.vmem [shape: bf16[128,128], index: 3, kind: input, shape index: {}]
  %s4 = inlined_call_operand.vmem [shape: f32[1,128], index: 4, kind: input, shape index: {}]
  %s5 = inlined_call_operand.vmem [shape: bf16[128,128], index: 5, kind: input, shape index: {}]
  %s6 = inlined_call_operand.vmem [shape: f32[1,128], index: 6, kind: input, shape index: {}]
  %s7 = inlined_call_operand.hbm [shape: bf16[8,128], index: 7, kind: output, shape index: {0}]
  %s8 = inlined_call_operand.vmem [shape: f32[8,128], index: 8, kind: output, shape index: {1}]
  %9 = xla_tuple %s7, %s8
  %s10 = sld [smem:[#allocation0]]
  $region46: #{roi_box_head_forward.1} parent=0
    _
  %s12 = ssub.s32 1, %s10
  %s13 = scalar_select 0, %s12, %s10
  $region1: #{roi_box_head_forward.1} parent=0
    #allocation3 [shape = 'u8[2048]{0}', space=vmem, size = 0x800, scoped, tag = 'output window, operand 0, single buffered']
    #allocation4 [shape = 's32[1]{0}', space=sflag, size = 0x4, scoped, tag = 'scoped memory for roi_box_head_forward.1']
    %14 = vsyncpa [#allocation4], 0
    // Predicated region
    $region2: #{roi_box_head_forward.1} parent=1 // pred_check
      _
    $region3: #{roi_box_head_forward.1} parent=1 // pred_check_branch
      %16 = sbr.rel (0) target = $region5
    $region4: #{roi_box_head_forward.1} parent=1 // pred_region
      _
    $region5: #{roi_box_head_forward.1} parent=1 // pred_fallthru
      _
    // Predicated region
    $region6: #{roi_box_head_forward.1} parent=1 // pred_check
      _
    $region7: #{roi_box_head_forward.1} parent=1 // pred_check_branch
      %18 = sbr.rel (0) target = $region9
    $region8: #{roi_box_head_forward.1} parent=1 // pred_region
      _
    $region9: #{roi_box_head_forward.1} parent=1 // pred_fallthru
      _
    // Predicated region
    $region10: #{roi_box_head_forward.1} parent=1 // pred_check
      _
    $region11: #{roi_box_head_forward.1} parent=1 // pred_check_branch
      %20 = sbr.rel (0) target = $region13
    $region12: #{roi_box_head_forward.1} parent=1 // pred_region
      _
    $region13: #{roi_box_head_forward.1} parent=1 // pred_fallthru
      _
    // Predicated region
    $region14: #{roi_box_head_forward.1} parent=1 // pred_check
      _
    $region15: #{roi_box_head_forward.1} parent=1 // pred_check_branch
      %22 = sbr.rel (0) target = $region17
    $region16: #{roi_box_head_forward.1} parent=1 // pred_region
      _
    $region17: #{roi_box_head_forward.1} parent=1 // pred_fallthru
      _
    // Predicated region
    $region18: #{roi_box_head_forward.1} parent=1 // pred_check
      _
    $region19: #{roi_box_head_forward.1} parent=1 // pred_check_branch
      %24 = sbr.rel (0) target = $region21
    $region20: #{roi_box_head_forward.1} parent=1 // pred_region
      _
    $region21: #{roi_box_head_forward.1} parent=1 // pred_fallthru
      _
    // Predicated region
    $region22: #{roi_box_head_forward.1} parent=1 // pred_check
      _
    $region23: #{roi_box_head_forward.1} parent=1 // pred_check_branch
      %26 = sbr.rel (0) target = $region25
    $region24: #{roi_box_head_forward.1} parent=1 // pred_region
      _
    $region25: #{roi_box_head_forward.1} parent=1 // pred_fallthru
      _
    // Predicated region
    $region26: #{roi_box_head_forward.1} parent=1 // pred_check
      _
    $region27: #{roi_box_head_forward.1} parent=1 // pred_check_branch
      %28 = sbr.rel (0) target = $region29
    $region28: #{roi_box_head_forward.1} parent=1 // pred_region
      _
    $region29: #{roi_box_head_forward.1} parent=1 // pred_fallthru
      _
    %v29 = vld [vmem:[%s0] sm:$0xf]
    %v30 = vld [vmem:[%s1] sm:$0xf]
    %v31 = vld [vmem:[%s1 + $0x4] sm:$0xf]
    %v32 = vld [vmem:[%s1 + $0x8] sm:$0xf]
    %v33 = vld [vmem:[%s1 + $0xc] sm:$0xf]
    %v34 = vld [vmem:[%s1 + $0x10] sm:$0xf]
    %v35 = vld [vmem:[%s1 + $0x14] sm:$0xf]
    %v36 = vld [vmem:[%s1 + $0x18] sm:$0xf]
    %v37 = vld [vmem:[%s1 + $0x1c] sm:$0xf]
    %v38 = vld [vmem:[%s1 + $0x20] sm:$0xf]
    %v39 = vld [vmem:[%s1 + $0x24] sm:$0xf]
    %v40 = vld [vmem:[%s1 + $0x28] sm:$0xf]
    %v41 = vld [vmem:[%s1 + $0x2c] sm:$0xf]
    %v42 = vld [vmem:[%s1 + $0x30] sm:$0xf]
    %v43 = vld [vmem:[%s1 + $0x34] sm:$0xf]
    %v44 = vld [vmem:[%s1 + $0x38] sm:$0xf]
    %v45 = vld [vmem:[%s1 + $0x3c] sm:$0xf]
    %v46 = vld [vmem:[%s2] sm:$0x1]
    %v48 = vperm.slane %v46, 0
    %v66 = vunpack.c.l.b16 %v30
    %v67 = vunpack.c.l.b16 %v31
    %v68 = vunpack.c.l.b16 %v32
    %v69 = vunpack.c.l.b16 %v33
    %v70 = vunpack.c.l.b16 %v34
    %v71 = vunpack.c.l.b16 %v35
    %v72 = vunpack.c.l.b16 %v36
    %v73 = vunpack.c.l.b16 %v37
    %v74 = vunpack.c.l.b16 %v38
    %v75 = vunpack.c.l.b16 %v39
    %v76 = vunpack.c.l.b16 %v40
    %v77 = vunpack.c.l.b16 %v41
    %v78 = vunpack.c.l.b16 %v42
    %v79 = vunpack.c.l.b16 %v43
    %v80 = vunpack.c.l.b16 %v44
    %v81 = vunpack.c.l.b16 %v45
    %v82 = vpack.c.b16 %v67, %v66
    %v83 = vpack.c.b16 %v69, %v68
    %v84 = vpack.c.b16 %v71, %v70
    %v85 = vpack.c.b16 %v73, %v72
    %v86 = vpack.c.b16 %v75, %v74
    %v87 = vpack.c.b16 %v77, %v76
    %v88 = vpack.c.b16 %v79, %v78
    %v89 = vpack.c.b16 %v81, %v80
    %98 = vmatpush.bf16.msra.mxu0 %v89
    %99 = vmatpush.bf16.msra.mxu0 %v88
    %100 = vmatpush.bf16.msra.mxu0 %v87
    %101 = vmatpush.bf16.msra.mxu0 %v86
    %102 = vmatpush.bf16.msra.mxu0 %v85
    %103 = vmatpush.bf16.msra.mxu0 %v84
    %104 = vmatpush.bf16.msra.mxu0 %v83
    %105 = vmatpush.bf16.msra.mxu0 %v82
    %106 = vmatmul.bf16.gmra.mxu0 %v29
    %v107 = vpop.f32.mrf.mxu0
    %v108 = vadd.f32 %v48, %v107
    %v109 = vpop.f32.mrf.mxu0
    %110 = vdwg.mxu0
    %v111 = vmax.f32 %v108, 0.0
    %v112 = vpack.c.bf16 %v111, %v111
    %113 = vst [vmem:[#allocation2] sm:$0xf] %v112
    %v114 = vld [vmem:[#allocation2] sm:$0xf]
    %v115 = vld [vmem:[%s3] sm:$0xf]
    %v116 = vld [vmem:[%s3 + $0x4] sm:$0xf]
    %v117 = vld [vmem:[%s3 + $0x8] sm:$0xf]
    %v118 = vld [vmem:[%s3 + $0xc] sm:$0xf]
    %v119 = vld [vmem:[%s3 + $0x10] sm:$0xf]
    %v120 = vld [vmem:[%s3 + $0x14] sm:$0xf]
    %v121 = vld [vmem:[%s3 + $0x18] sm:$0xf]
    %v122 = vld [vmem:[%s3 + $0x1c] sm:$0xf]
    %v123 = vld [vmem:[%s3 + $0x20] sm:$0xf]
    %v124 = vld [vmem:[%s3 + $0x24] sm:$0xf]
    %v125 = vld [vmem:[%s3 + $0x28] sm:$0xf]
    %v126 = vld [vmem:[%s3 + $0x2c] sm:$0xf]
    %v127 = vld [vmem:[%s3 + $0x30] sm:$0xf]
    %v128 = vld [vmem:[%s3 + $0x34] sm:$0xf]
    %v129 = vld [vmem:[%s3 + $0x38] sm:$0xf]
    %v130 = vld [vmem:[%s3 + $0x3c] sm:$0xf]
    %v131 = vld [vmem:[%s4] sm:$0x1]
    %v133 = vperm.slane %v131, 0
    %v151 = vunpack.c.l.b16 %v115
    %v152 = vunpack.c.l.b16 %v116
    %v153 = vunpack.c.l.b16 %v117
    %v154 = vunpack.c.l.b16 %v118
    %v155 = vunpack.c.l.b16 %v119
    %v156 = vunpack.c.l.b16 %v120
    %v157 = vunpack.c.l.b16 %v121
    %v158 = vunpack.c.l.b16 %v122
    %v159 = vunpack.c.l.b16 %v123
    %v160 = vunpack.c.l.b16 %v124
    %v161 = vunpack.c.l.b16 %v125
    %v162 = vunpack.c.l.b16 %v126
    %v163 = vunpack.c.l.b16 %v127
    %v164 = vunpack.c.l.b16 %v128
    %v165 = vunpack.c.l.b16 %v129
    %v166 = vunpack.c.l.b16 %v130
    %v167 = vpack.c.b16 %v152, %v151
    %v168 = vpack.c.b16 %v154, %v153
    %v169 = vpack.c.b16 %v156, %v155
    %v170 = vpack.c.b16 %v158, %v157
    %v171 = vpack.c.b16 %v160, %v159
    %v172 = vpack.c.b16 %v162, %v161
    %v173 = vpack.c.b16 %v164, %v163
    %v174 = vpack.c.b16 %v166, %v165
    %183 = vmatpush.bf16.msra.mxu0 %v174
    %184 = vmatpush.bf16.msra.mxu0 %v173
    %185 = vmatpush.bf16.msra.mxu0 %v172
    %186 = vmatpush.bf16.msra.mxu0 %v171
    %187 = vmatpush.bf16.msra.mxu0 %v170
    %188 = vmatpush.bf16.msra.mxu0 %v169
    %189 = vmatpush.bf16.msra.mxu0 %v168
    %190 = vmatpush.bf16.msra.mxu0 %v167
    %191 = vmatmul.bf16.gmra.mxu0 %v114
    %v192 = vpop.f32.mrf.mxu0
    %v193 = vadd.f32 %v133, %v192
    %v194 = vpop.f32.mrf.mxu0
    %195 = vdwg.mxu0
    %v196 = vmax.f32 %v193, 0.0
    %v197 = vpack.c.bf16 %v196, %v196
    %198 = vst [vmem:[#allocation3] sm:$0xf] %v197
    %v199 = vld [vmem:[#allocation3] sm:$0xf]
    %v200 = vld [vmem:[%s5] sm:$0xf]
    %v201 = vld [vmem:[%s5 + $0x4] sm:$0xf]
    %v202 = vld [vmem:[%s5 + $0x8] sm:$0xf]
    %v203 = vld [vmem:[%s5 + $0xc] sm:$0xf]
    %v204 = vld [vmem:[%s5 + $0x10] sm:$0xf]
    %v205 = vld [vmem:[%s5 + $0x14] sm:$0xf]
    %v206 = vld [vmem:[%s5 + $0x18] sm:$0xf]
    %v207 = vld [vmem:[%s5 + $0x1c] sm:$0xf]
    %v208 = vld [vmem:[%s5 + $0x20] sm:$0xf]
    %v209 = vld [vmem:[%s5 + $0x24] sm:$0xf]
    %v210 = vld [vmem:[%s5 + $0x28] sm:$0xf]
    %v211 = vld [vmem:[%s5 + $0x2c] sm:$0xf]
    %v212 = vld [vmem:[%s5 + $0x30] sm:$0xf]
    %v213 = vld [vmem:[%s5 + $0x34] sm:$0xf]
    %v214 = vld [vmem:[%s5 + $0x38] sm:$0xf]
    %v215 = vld [vmem:[%s5 + $0x3c] sm:$0xf]
    %v216 = vld [vmem:[%s6] sm:$0x1]
    %v218 = vperm.slane %v216, 0
    %v236 = vunpack.c.l.b16 %v200
    %v237 = vunpack.c.l.b16 %v201
    %v238 = vunpack.c.l.b16 %v202
    %v239 = vunpack.c.l.b16 %v203
    %v240 = vunpack.c.l.b16 %v204
    %v241 = vunpack.c.l.b16 %v205
    %v242 = vunpack.c.l.b16 %v206
    %v243 = vunpack.c.l.b16 %v207
    %v244 = vunpack.c.l.b16 %v208
    %v245 = vunpack.c.l.b16 %v209
    %v246 = vunpack.c.l.b16 %v210
    %v247 = vunpack.c.l.b16 %v211
    %v248 = vunpack.c.l.b16 %v212
    %v249 = vunpack.c.l.b16 %v213
    %v250 = vunpack.c.l.b16 %v214
    %v251 = vunpack.c.l.b16 %v215
    %v252 = vpack.c.b16 %v237, %v236
    %v253 = vpack.c.b16 %v239, %v238
    %v254 = vpack.c.b16 %v241, %v240
    %v255 = vpack.c.b16 %v243, %v242
    %v256 = vpack.c.b16 %v245, %v244
    %v257 = vpack.c.b16 %v247, %v246
    %v258 = vpack.c.b16 %v249, %v248
    %v259 = vpack.c.b16 %v251, %v250
    %268 = vmatpush.bf16.msra.mxu0 %v259
    %269 = vmatpush.bf16.msra.mxu0 %v258
    %270 = vmatpush.bf16.msra.mxu0 %v257
    %271 = vmatpush.bf16.msra.mxu0 %v256
    %272 = vmatpush.bf16.msra.mxu0 %v255
    %273 = vmatpush.bf16.msra.mxu0 %v254
    %274 = vmatpush.bf16.msra.mxu0 %v253
    %275 = vmatpush.bf16.msra.mxu0 %v252
    %276 = vmatmul.bf16.gmra.mxu0 %v199
    %v277 = vpop.f32.mrf.mxu0
    %v278 = vadd.f32 %v218, %v277
    %v279 = vpop.f32.mrf.mxu0
    %280 = vdwg.mxu0
    %281 = vst [vmem:[%s8] sm:$0xff] %v278
    // Predicated region
    $region30: #{roi_box_head_forward.1} parent=1 // pred_check
      _
    $region31: #{roi_box_head_forward.1} parent=1 // pred_check_branch
      %283 = sbr.rel (0) target = $region33
    $region32: #{roi_box_head_forward.1} parent=1 // pred_region
      %285 = vsyncadd [#allocation4], 0
      %s287 = sshll.u32 [#allocation3], 4
      %s288 = int_to_ptr.vmem [resolvable:$true] %s287
      %s289 = sshll.u32 %s7, 4
      %s290 = int_to_ptr.hbm [resolvable:$true] %s289
      %292 = dma.vmem_to_hbm [thread:$0]  %s288, 64, %s290, [#allocation4]
    $region33: #{roi_box_head_forward.1} parent=1 // pred_fallthru
      _
    // Predicated region
    $region34: #{roi_box_head_forward.1} parent=1 // pred_check
      _
    $region35: #{roi_box_head_forward.1} parent=1 // pred_check_branch
      %294 = sbr.rel (0) target = $region37
    $region36: #{roi_box_head_forward.1} parent=1 // pred_region
      _
    $region37: #{roi_box_head_forward.1} parent=1 // pred_fallthru
      _
    // Predicated region
    $region38: #{roi_box_head_forward.1} parent=1 // pred_check
      _
    $region39: #{roi_box_head_forward.1} parent=1 // pred_check_branch
      %296 = sbr.rel (0) target = $region41
    $region40: #{roi_box_head_forward.1} parent=1 // pred_region
      %298 = dma.done [#allocation4], 64
    $region41: #{roi_box_head_forward.1} parent=1 // pred_fallthru
      _
    // Predicated region
    $region42: #{roi_box_head_forward.1} parent=1 // pred_check
      _
    $region43: #{roi_box_head_forward.1} parent=1 // pred_check_branch
      %300 = sbr.rel (0) target = $region45
    $region44: #{roi_box_head_forward.1} parent=1 // pred_region
      _
    $region45: #{roi_box_head_forward.1} parent=1 // pred_fallthru
      _
    %301 = vsyncpa [#allocation4], 1

</llo_original>
